<compile_context>
chip_gen: v6e
topology: v6e:2x2x1
jax: 0.10.0
libtpu: 0.0.40
codegen_flags: <defaults>
</compile_context>

<pallas_src>
from functools import partial

import jax
import jax.numpy as jnp
from jax.experimental import pallas as pl
from jax.experimental.pallas import tpu as pltpu


# ---------------------------------------------------------------------------
# Tile / VMEM helpers
# ---------------------------------------------------------------------------
def _pick_tile(dim, cap, align):
    """Tile for a parallel (non-reduction) dim: full dim if small, else prefer a
    divisor of `dim` aligned to `align`, else `cap` (edge blocks are masked)."""
    if dim <= cap:
        return dim
    for t in range(cap, cap // 2 - 1, -1):
        if t % align == 0 and dim % t == 0:
            return t
    return cap


def _pick_reduce_tile(dim, cap, align=128):
    """Tile for the K (reduction) dim: must divide `dim` exactly, lane aligned."""
    if dim <= cap:
        return dim
    for t in range(cap, align - 1, -1):
        if t % align == 0 and dim % t == 0:
            return t
    return dim  # fall back to a single full-K block


def _pick_q_tile(n, cap=512):
    """Query-tile size: full N if small, else a divisor of N that's a multiple of 8."""
    if n <= cap:
        return n
    for t in range(cap, 7, -1):
        if t % 8 == 0 and n % t == 0:
            return t
    return n


def _vmem_limit(block_bytes, scratch_bytes=0):
    """Footprint-derived VMEM limit: double-buffered blocks + scratch + headroom,
    clamped to [32 MiB, 64 MiB] (64 MiB = v7x physical VMEM per TensorCore)."""
    footprint = 2 * block_bytes + scratch_bytes
    return int(max(32 << 20, min(footprint * 3 // 2 + (8 << 20), 64 << 20)))


# ---------------------------------------------------------------------------
# Tiled linear kernels (bf16 MXU operands, f32 accumulation)
# Weight stays in PyTorch (out_features, in_features) layout; contraction over
# the last dim of both operands (x @ W^T) -- no wrapper-side transpose pass.
# ---------------------------------------------------------------------------
def _mxu_operands(x_ref, w_ref):
    x = x_ref[...]
    w = w_ref[...]
    if x.dtype != jnp.bfloat16:
        x = x.astype(jnp.bfloat16)
    if w.dtype != jnp.bfloat16:
        w = w.astype(jnp.bfloat16)
    return x, w


def _matmul_kernel(x_ref, w_ref, o_ref, acc_ref):
    @pl.when(pl.program_id(2) == 0)
    def _init():
        acc_ref[...] = jnp.zeros_like(acc_ref)

    x, w = _mxu_operands(x_ref, w_ref)
    acc_ref[...] += jax.lax.dot_general(
        x, w, (((1,), (1,)), ((), ())), preferred_element_type=jnp.float32)

    @pl.when(pl.program_id(2) == pl.num_programs(2) - 1)
    def _done():
        o_ref[...] = acc_ref[...].astype(o_ref.dtype)


def _matmul_bias_kernel(x_ref, w_ref, b_ref, o_ref, acc_ref):
    @pl.when(pl.program_id(2) == 0)
    def _init():
        acc_ref[...] = jnp.zeros_like(acc_ref)

    x, w = _mxu_operands(x_ref, w_ref)
    acc_ref[...] += jax.lax.dot_general(
        x, w, (((1,), (1,)), ((), ())), preferred_element_type=jnp.float32)

    @pl.when(pl.program_id(2) == pl.num_programs(2) - 1)
    def _done():
        o_ref[...] = (acc_ref[...] + b_ref[...]).astype(o_ref.dtype)


def _pallas_linear(x2d, w, bias=None, *, out_dtype=None,
                   tm_cap=512, tn_cap=512, tk_cap=1024):
    """x2d: (M, K); w: (N, K) PyTorch Linear layout; bias: (N,) or None -> (M, N)."""
    M, K = x2d.shape
    Nout, Kw = w.shape
    assert Kw == K
    if out_dtype is None:
        out_dtype = x2d.dtype

    tm = _pick_tile(M, tm_cap, 8)
    tn = _pick_tile(Nout, tn_cap, 128)
    tk = _pick_reduce_tile(K, tk_cap)

    grid = (pl.cdiv(M, tm), pl.cdiv(Nout, tn), K // tk)

    in_specs = [
        pl.BlockSpec((tm, tk), lambda i, j, k: (i, k)),
        pl.BlockSpec((tn, tk), lambda i, j, k: (j, k)),   # (N, K) layout, no .T pass
    ]
    args = [x2d, w]
    kernel = _matmul_kernel
    bias_bytes = 0
    if bias is not None:
        in_specs.append(pl.BlockSpec((1, tn), lambda i, j, k: (0, j)))
        args.append(bias.reshape(1, Nout))
        kernel = _matmul_bias_kernel
        bias_bytes = tn * bias.dtype.itemsize

    blk = (tm * tk * x2d.dtype.itemsize
           + tn * tk * w.dtype.itemsize
           + tm * tn * jnp.dtype(out_dtype).itemsize
           + bias_bytes)
    scratch = tm * tn * 4

    return pl.pallas_call(
        kernel,
        out_shape=jax.ShapeDtypeStruct((M, Nout), out_dtype),
        grid=grid,
        in_specs=in_specs,
        out_specs=pl.BlockSpec((tm, tn), lambda i, j, k: (i, j)),
        scratch_shapes=[pltpu.VMEM((tm, tn), jnp.float32)],
        compiler_params=pltpu.CompilerParams(
            dimension_semantics=("parallel", "parallel", "arbitrary"),
            vmem_limit_bytes=_vmem_limit(blk, scratch),
        ),
    )(*args)


# ---------------------------------------------------------------------------
# Attention core: head split/merge fused into BlockSpec index maps
# ---------------------------------------------------------------------------
def _make_attn_kernel(hb, dh, scale):
    def _attn_kernel(q_ref, k_ref, v_ref, o_ref):
        # q_ref/o_ref: (1, tq, hb*dh); k_ref/v_ref: (1, N, hb*dh)
        outs = []
        # Unrolled head loop: head i+1's QK^T (MXU) overlaps head i's
        # exp/reciprocal (EUP) and max/sum reductions (XLU).
        for i in range(hb):
            sl = slice(i * dh, (i + 1) * dh)
            # Fold the softmax scale into q (tq*Dh multiplies instead of tq*N).
            q = (q_ref[0, :, sl] * scale).astype(jnp.bfloat16)   # (tq, Dh)
            k = k_ref[0, :, sl].astype(jnp.bfloat16)             # (N,  Dh)
            v = v_ref[0, :, sl].astype(jnp.bfloat16)             # (N,  Dh)
            # q @ k^T without an explicit transpose: contract over Dh.
            dots = jax.lax.dot_general(
                q, k, (((1,), (1,)), ((), ())),
                preferred_element_type=jnp.float32)              # (tq, N) f32
            dots = dots - jnp.max(dots, axis=-1, keepdims=True)
            p = jnp.exp(dots)
            p = p * pl.reciprocal(jnp.sum(p, axis=-1, keepdims=True), approx=True)
            o = jnp.dot(p.astype(jnp.bfloat16), v,
                        preferred_element_type=jnp.float32)      # (tq, Dh) f32
            outs.append(o.astype(o_ref.dtype))
        # Single lane-dense store of the full (tq, hb*dh) slab (no per-head
        # 64-lane masked partial stores).
        o_ref[0] = outs[0] if hb == 1 else jnp.concatenate(outs, axis=-1)

    return _attn_kernel


def _pallas_attention(qkv, heads, dim_head, scale, out_dtype):
    """qkv: (B, N, 3*H*Dh) fused projection -> (B, N, H*Dh) attention output."""
    B, N, _ = qkv.shape
    H, Dh = heads, dim_head
    inner = H * Dh
    esz = qkv.dtype.itemsize
    osz = jnp.dtype(out_dtype).itemsize
    tq = _pick_q_tile(N)

    # Heads per grid step: smallest divisor of H whose block width is a clean
    # multiple of 128 lanes (lane-dense, unmasked loads/stores).
    Hb = None
    for cand in range(1, H + 1):
        if H % cand == 0 and (cand * Dh) % 128 == 0:
            Hb = cand
            break

    if Hb is not None:
        # Fused path: q/k/v views carved out of the fused qkv tensor by index_map.
        G = H // Hb
        hd = Hb * Dh
        grid = (B, G, N // tq)
        blk = (tq * hd * esz + 2 * N * hd * esz + tq * hd * osz)
        scratch = Hb * tq * N * 4  # live f32 score matrices (unrolled head loop)
        return pl.pallas_call(
            _make_attn_kernel(Hb, Dh, scale),
            out_shape=jax.ShapeDtypeStruct((B, N, inner), out_dtype),
            grid=grid,
            in_specs=[pl.BlockSpec((1, tq, hd), lambda b, g, t: (b, t, g)),
                      pl.BlockSpec((1, N, hd), lambda b, g, t: (b, 0, G + g)),
                      pl.BlockSpec((1, N, hd), lambda b, g, t: (b, 0, 2 * G + g))],
            out_specs=pl.BlockSpec((1, tq, hd), lambda b, g, t: (b, t, g)),
            compiler_params=pltpu.CompilerParams(
                dimension_semantics=("parallel", "parallel", "parallel"),
                vmem_limit_bytes=_vmem_limit(blk, scratch),
            ),
        )(qkv, qkv, qkv)

    # Fallback (e.g. H*Dh not a multiple of 128): split q/k/v at the XLA level
    # and use full-`inner`-wide blocks (block last dim == full array dim).
    q, k, v = jnp.split(qkv, 3, axis=-1)
    grid = (B, N // tq)
    blk = (tq * inner * esz + 2 * N * inner * esz + tq * inner * osz)
    scratch = H * tq * N * 4
    return pl.pallas_call(
        _make_attn_kernel(H, Dh, scale),
        out_shape=jax.ShapeDtypeStruct((B, N, inner), out_dtype),
        grid=grid,
        in_specs=[pl.BlockSpec((1, tq, inner), lambda b, t: (b, t, 0)),
                  pl.BlockSpec((1, N, inner), lambda b, t: (b, 0, 0)),
                  pl.BlockSpec((1, N, inner), lambda b, t: (b, 0, 0))],
        out_specs=pl.BlockSpec((1, tq, inner), lambda b, t: (b, t, 0)),
        compiler_params=pltpu.CompilerParams(
            dimension_semantics=("parallel", "parallel"),
            vmem_limit_bytes=_vmem_limit(blk, scratch),
        ),
    )(q, k, v)


# ---------------------------------------------------------------------------
# Full forward
# ---------------------------------------------------------------------------
@partial(jax.jit, static_argnames=("heads", "dim_head"))
def attention_forward(x, params, *, heads, dim_head):
    """Full Attention.forward. x: (B, N, dim). Weights in PyTorch (out, in) layout
    (ideally pre-cast to bf16 once outside this jitted function)."""
    B, N, dim = x.shape
    inner_dim = heads * dim_head
    scale = dim_head ** (-0.5)

    # to_qkv (no bias): (B*N, dim) x (3*inner, dim)^T, bf16 output at HBM.
    qkv = _pallas_linear(x.reshape(B * N, dim), params["w_qkv"],
                         out_dtype=jnp.bfloat16)
    qkv = qkv.reshape(B, N, 3 * inner_dim)

    # Attention core; 'b n (h d) -> b h n d' and back are fused into the
    # BlockSpec index maps (no HBM transposes). bf16 output at HBM.
    out = _pallas_attention(qkv, heads, dim_head, scale, jnp.bfloat16)  # (B,N,inner)

    project_out = not (heads == 1 and dim_head == dim)
    if project_out:
        y = _pallas_linear(out.reshape(B * N, inner_dim), params["w_out"],
                           params["b_out"], out_dtype=x.dtype)          # (B*N, dim)
        return y.reshape(B, N, dim)
    return out.astype(x.dtype)


# ---------------------------------------------------------------------------
# Reference (plain JAX, f32) for self-check
# ---------------------------------------------------------------------------
def attention_reference(x, params, heads, dim_head):
    B, N, dim = x.shape
    inner_dim = heads * dim_head
    scale = dim_head ** (-0.5)
    qkv = x @ params["w_qkv"].T
    q, k, v = jnp.split(qkv, 3, axis=-1)

    def to_heads(t):
        return t.reshape(B, N, heads, dim_head).transpose(0, 2, 1, 3)

    q, k, v = to_heads(q), to_heads(k), to_heads(v)
    dots = jnp.einsum("bhnd,bhmd->bhnm", q, k) * scale
    attn = jax.nn.softmax(dots, axis=-1)
    out = jnp.einsum("bhnm,bhmd->bhnd", attn, v)
    out = out.transpose(0, 2, 1, 3).reshape(B, N, inner_dim)
    return out @ params["w_out"].T + params["b_out"]


# ---------------------------------------------------------------------------
if __name__ == "__main__":
    # Small, module-consistent shapes (dim_head=64 keeps blocks lane-aligned).
    B, N, dim = 2, 8, 32
    heads, dim_head = 2, 64
    inner_dim = heads * dim_head  # 128

    key = jax.random.PRNGKey(0)
    kx, kqkv, kwo, kbo = jax.random.split(key, 4)

    x = jax.random.normal(kx, (B, N, dim), dtype=jnp.float32)
    # PyTorch Linear weight layout: (out_features, in_features), f32 "master" copy.
    params_f32 = {
        "w_qkv": jax.random.normal(kqkv, (3 * inner_dim, dim), dtype=jnp.float32) * 0.05,
        "w_out": jax.random.normal(kwo, (dim, inner_dim), dtype=jnp.float32) * 0.05,
        "b_out": jax.random.normal(kbo, (dim,), dtype=jnp.float32) * 0.05,
    }
    # Pre-cast the reused weights to bf16 once, OUTSIDE the jitted forward.
    params_dev = {
        "w_qkv": params_f32["w_qkv"].astype(jnp.bfloat16),
        "w_out": params_f32["w_out"].astype(jnp.bfloat16),
        "b_out": params_f32["b_out"],  # bias stays f32 (added to the f32 accumulator)
    }

    y = attention_forward(x, params_dev, heads=heads, dim_head=dim_head)
    y = jax.block_until_ready(y)

    y_ref = attention_reference(x, params_f32, heads, dim_head)
    assert y.shape == (B, N, dim)
    max_err = float(jnp.max(jnp.abs(y - y_ref)))
    # bf16 HBM activations/weights (f32 accumulation) + approx reciprocal
    assert jnp.allclose(y, y_ref, atol=2e-2, rtol=2e-2), \
        f"mismatch vs reference, max |err|={max_err}"

    print("KERNEL_OK")
</pallas_src>

<mosaic_0001>
module attributes {stable_mosaic.version = 11 : i64} {
  func.func @_matmul_bias_kernel(%arg0: i32, %arg1: i32, %arg2: i32, %arg3: memref<16x128xbf16, #tpu.memory_space<vmem>>, %arg4: memref<32x128xbf16, #tpu.memory_space<vmem>>, %arg5: memref<1x32xf32, #tpu.memory_space<vmem>>, %arg6: memref<16x32xf32, #tpu.memory_space<vmem>>, %arg7: memref<16x32xf32, #tpu.memory_space<vmem>>) attributes {dimension_semantics = [#tpu.dimension_semantics<parallel>, #tpu.dimension_semantics<parallel>, #tpu.dimension_semantics<arbitrary>], iteration_bounds = array<i64: 1, 1, 1>, scalar_prefetch = 0 : i64, scratch_operands = 1 : i64, tpu.core_type = #tpu.core_type<tc>, window_params = [{transform_indices = @transform_0, window_bounds = array<i64: 16, 128>}, {transform_indices = @transform_1, window_bounds = array<i64: 32, 128>}, {transform_indices = @transform_2, window_bounds = array<i64: 1, 32>}, {transform_indices = @transform_3, window_bounds = array<i64: 16, 32>}]} {
    %c0_i32 = arith.constant 0 : i32
    %0 = arith.cmpi eq, %arg2, %c0_i32 : i32
    %1 = arith.extui %0 : i1 to i32
    %c0_i32_0 = arith.constant 0 : i32
    %2 = arith.cmpi ne, %1, %c0_i32_0 : i32
    scf.if %2 {
      %cst_10 = arith.constant 0.000000e+00 : f32
      %12 = vector.broadcast %cst_10 : f32 to vector<16x32xf32>
      %c0_11 = arith.constant 0 : index
      %c0_12 = arith.constant 0 : index
      %13 = vector.load %arg7[%c0_11, %c0_12] : memref<16x32xf32, #tpu.memory_space<vmem>>, vector<16x32xf32>
      tpu.vector_store %arg7[%c0_11, %c0_12], %12 {strides = array<i32>} : memref<16x32xf32, #tpu.memory_space<vmem>>, vector<16x32xf32>,
    } else {
    }
    %c0 = arith.constant 0 : index
    %c0_1 = arith.constant 0 : index
    %3 = vector.load %arg3[%c0, %c0_1] : memref<16x128xbf16, #tpu.memory_space<vmem>>, vector<16x128xbf16>
    %c0_2 = arith.constant 0 : index
    %c0_3 = arith.constant 0 : index
    %4 = vector.load %arg4[%c0_2, %c0_3] : memref<32x128xbf16, #tpu.memory_space<vmem>>, vector<32x128xbf16>
    %c0_4 = arith.constant 0 : index
    %c0_5 = arith.constant 0 : index
    %5 = vector.load %arg7[%c0_4, %c0_5] : memref<16x32xf32, #tpu.memory_space<vmem>>, vector<16x32xf32>
    %cst = arith.constant dense<0.000000e+00> : vector<16x32xf32>
    %6 = tpu.matmul %3, %4, %cst {dimension_numbers = #tpu.dot_dimension_numbers<[1], [1], [0], [0], [0, 0, 1, 0], [], []>} : vector<16x128xbf16>, vector<32x128xbf16>, vector<16x32xf32> -> vector<16x32xf32>
    %7 = arith.addf %5, %6 : vector<16x32xf32>
    %c0_6 = arith.constant 0 : index
    %c0_7 = arith.constant 0 : index
    %8 = vector.load %arg7[%c0_6, %c0_7] : memref<16x32xf32, #tpu.memory_space<vmem>>, vector<16x32xf32>
    tpu.vector_store %arg7[%c0_6, %c0_7], %7 {strides = array<i32>} : memref<16x32xf32, #tpu.memory_space<vmem>>, vector<16x32xf32>,
    %c0_i32_8 = arith.constant 0 : i32
    %9 = arith.cmpi eq, %arg2, %c0_i32_8 : i32
    %10 = arith.extui %9 : i1 to i32
    %c0_i32_9 = arith.constant 0 : i32
    %11 = arith.cmpi ne, %10, %c0_i32_9 : i32
    scf.if %11 {
      %c0_10 = arith.constant 0 : index
      %c0_11 = arith.constant 0 : index
      %12 = vector.load %arg7[%c0_10, %c0_11] : memref<16x32xf32, #tpu.memory_space<vmem>>, vector<16x32xf32>
      %c0_12 = arith.constant 0 : index
      %c0_13 = arith.constant 0 : index
      %13 = vector.load %arg5[%c0_12, %c0_13] : memref<1x32xf32, #tpu.memory_space<vmem>>, vector<1x32xf32>
      %14 = vector.broadcast %13 : vector<1x32xf32> to vector<16x32xf32>
      %15 = arith.addf %12, %14 : vector<16x32xf32>
      %c0_14 = arith.constant 0 : index
      %c0_15 = arith.constant 0 : index
      %16 = vector.load %arg6[%c0_14, %c0_15] : memref<16x32xf32, #tpu.memory_space<vmem>>, vector<16x32xf32>
      tpu.vector_store %arg6[%c0_14, %c0_15], %15 {strides = array<i32>} : memref<16x32xf32, #tpu.memory_space<vmem>>, vector<16x32xf32>,
    } else {
    }
    return
  }
  func.func @transform_0(%arg0: i32, %arg1: i32, %arg2: i32) -> (i32, i32) {
    %c0_i32 = arith.constant 0 : i32
    return %arg0, %arg2 : i32, i32
  }
  func.func @transform_1(%arg0: i32, %arg1: i32, %arg2: i32) -> (i32, i32) {
    %c0_i32 = arith.constant 0 : i32
    return %arg1, %arg2 : i32, i32
  }
  func.func @transform_2(%arg0: i32, %arg1: i32, %arg2: i32) -> (i32, i32) {
    %c0_i32 = arith.constant 0 : i32
    %c0_i32_0 = arith.constant 0 : i32
    return %c0_i32, %arg1 : i32, i32
  }
  func.func @transform_3(%arg0: i32, %arg1: i32, %arg2: i32) -> (i32, i32) {
    %c0_i32 = arith.constant 0 : i32
    return %arg0, %arg1 : i32, i32
  }
}

module attributes {stable_mosaic.version = 11 : i64} {
  func.func @_attn_kernel(%arg0: i32, %arg1: i32, %arg2: i32, %arg3: memref<1x8x128xbf16, #tpu.memory_space<vmem>>, %arg4: memref<1x8x128xbf16, #tpu.memory_space<vmem>>, %arg5: memref<1x8x128xbf16, #tpu.memory_space<vmem>>, %arg6: memref<1x8x128xbf16, #tpu.memory_space<vmem>>) attributes {dimension_semantics = [#tpu.dimension_semantics<parallel>, #tpu.dimension_semantics<parallel>, #tpu.dimension_semantics<parallel>], iteration_bounds = array<i64: 2, 1, 1>, scalar_prefetch = 0 : i64, scratch_operands = 0 : i64, tpu.core_type = #tpu.core_type<tc>, window_params = [{transform_indices = @transform_0, window_bounds = array<i64: 1, 8, 128>}, {transform_indices = @transform_1, window_bounds = array<i64: 1, 8, 128>}, {transform_indices = @transform_2, window_bounds = array<i64: 1, 8, 128>}, {transform_indices = @transform_3, window_bounds = array<i64: 1, 8, 128>}]} {
    %c0 = arith.constant 0 : index
    %c0_0 = arith.constant 0 : index
    %c0_1 = arith.constant 0 : index
    %0 = vector.load %arg3[%c0, %c0_0, %c0_1] : memref<1x8x128xbf16, #tpu.memory_space<vmem>>, vector<1x8x64xbf16>
    %1 = vector.shape_cast %0 : vector<1x8x64xbf16> to vector<8x64xbf16>
    %cst = arith.constant 1.250000e-01 : bf16
    %2 = vector.broadcast %cst : bf16 to vector<8x64xbf16>
    %3 = arith.mulf %1, %2 : vector<8x64xbf16>
    %c0_2 = arith.constant 0 : index
    %c0_3 = arith.constant 0 : index
    %c0_4 = arith.constant 0 : index
    %4 = vector.load %arg4[%c0_2, %c0_3, %c0_4] : memref<1x8x128xbf16, #tpu.memory_space<vmem>>, vector<1x8x64xbf16>
    %5 = vector.shape_cast %4 : vector<1x8x64xbf16> to vector<8x64xbf16>
    %c0_5 = arith.constant 0 : index
    %c0_6 = arith.constant 0 : index
    %c0_7 = arith.constant 0 : index
    %6 = vector.load %arg5[%c0_5, %c0_6, %c0_7] : memref<1x8x128xbf16, #tpu.memory_space<vmem>>, vector<1x8x64xbf16>
    %7 = vector.shape_cast %6 : vector<1x8x64xbf16> to vector<8x64xbf16>
    %cst_8 = arith.constant dense<0.000000e+00> : vector<8x8xf32>
    %8 = tpu.matmul %3, %5, %cst_8 {dimension_numbers = #tpu.dot_dimension_numbers<[1], [1], [0], [0], [0, 0, 1, 0], [], []>} : vector<8x64xbf16>, vector<8x64xbf16>, vector<8x8xf32> -> vector<8x8xf32>
    %cst_9 = arith.constant dense<0xFF800000> : vector<8xf32>
    %9 = vector.multi_reduction <maximumf>, %8, %cst_9 [1] : vector<8x8xf32> to vector<8xf32>
    %10 = vector.shape_cast %9 : vector<8xf32> to vector<8x1xf32>
    %11 = vector.broadcast %10 : vector<8x1xf32> to vector<8x8xf32>
    %12 = arith.subf %8, %11 : vector<8x8xf32>
    %13 = math.exp %12 : vector<8x8xf32>
    %cst_10 = arith.constant dense<0.000000e+00> : vector<8xf32>
    %14 = vector.multi_reduction <add>, %13, %cst_10 [1] : vector<8x8xf32> to vector<8xf32>
    %15 = vector.shape_cast %14 : vector<8xf32> to vector<8x1xf32>
    %16 = tpu.reciprocal %15 {approx = true} : vector<8x1xf32> -> vector<8x1xf32>
    %17 = vector.broadcast %16 : vector<8x1xf32> to vector<8x8xf32>
    %18 = arith.mulf %13, %17 : vector<8x8xf32>
    %19 = arith.truncf %18 : vector<8x8xf32> to vector<8x8xbf16>
    %cst_11 = arith.constant dense<0.000000e+00> : vector<8x64xf32>
    %20 = tpu.matmul %19, %7, %cst_11 {dimension_numbers = #tpu.dot_dimension_numbers<[1], [0], [0], [1], [0, 0, 1, 1], [], []>} : vector<8x8xbf16>, vector<8x64xbf16>, vector<8x64xf32> -> vector<8x64xf32>
    %21 = arith.truncf %20 : vector<8x64xf32> to vector<8x64xbf16>
    %c0_12 = arith.constant 0 : index
    %c0_13 = arith.constant 0 : index
    %c64 = arith.constant 64 : index
    %22 = vector.load %arg3[%c0_12, %c0_13, %c64] : memref<1x8x128xbf16, #tpu.memory_space<vmem>>, vector<1x8x64xbf16>
    %23 = vector.shape_cast %22 : vector<1x8x64xbf16> to vector<8x64xbf16>
    %cst_14 = arith.constant 1.250000e-01 : bf16
    %24 = vector.broadcast %cst_14 : bf16 to vector<8x64xbf16>
    %25 = arith.mulf %23, %24 : vector<8x64xbf16>
    %c0_15 = arith.constant 0 : index
    %c0_16 = arith.constant 0 : index
    %c64_17 = arith.constant 64 : index
    %26 = vector.load %arg4[%c0_15, %c0_16, %c64_17] : memref<1x8x128xbf16, #tpu.memory_space<vmem>>, vector<1x8x64xbf16>
    %27 = vector.shape_cast %26 : vector<1x8x64xbf16> to vector<8x64xbf16>
    %c0_18 = arith.constant 0 : index
    %c0_19 = arith.constant 0 : index
    %c64_20 = arith.constant 64 : index
    %28 = vector.load %arg5[%c0_18, %c0_19, %c64_20] : memref<1x8x128xbf16, #tpu.memory_space<vmem>>, vector<1x8x64xbf16>
    %29 = vector.shape_cast %28 : vector<1x8x64xbf16> to vector<8x64xbf16>
    %cst_21 = arith.constant dense<0.000000e+00> : vector<8x8xf32>
    %30 = tpu.matmul %25, %27, %cst_21 {dimension_numbers = #tpu.dot_dimension_numbers<[1], [1], [0], [0], [0, 0, 1, 0], [], []>} : vector<8x64xbf16>, vector<8x64xbf16>, vector<8x8xf32> -> vector<8x8xf32>
    %cst_22 = arith.constant dense<0xFF800000> : vector<8xf32>
    %31 = vector.multi_reduction <maximumf>, %30, %cst_22 [1] : vector<8x8xf32> to vector<8xf32>
    %32 = vector.shape_cast %31 : vector<8xf32> to vector<8x1xf32>
    %33 = vector.broadcast %32 : vector<8x1xf32> to vector<8x8xf32>
    %34 = arith.subf %30, %33 : vector<8x8xf32>
    %35 = math.exp %34 : vector<8x8xf32>
    %cst_23 = arith.constant dense<0.000000e+00> : vector<8xf32>
    %36 = vector.multi_reduction <add>, %35, %cst_23 [1] : vector<8x8xf32> to vector<8xf32>
    %37 = vector.shape_cast %36 : vector<8xf32> to vector<8x1xf32>
    %38 = tpu.reciprocal %37 {approx = true} : vector<8x1xf32> -> vector<8x1xf32>
    %39 = vector.broadcast %38 : vector<8x1xf32> to vector<8x8xf32>
    %40 = arith.mulf %35, %39 : vector<8x8xf32>
    %41 = arith.truncf %40 : vector<8x8xf32> to vector<8x8xbf16>
    %cst_24 = arith.constant dense<0.000000e+00> : vector<8x64xf32>
    %42 = tpu.matmul %41, %29, %cst_24 {dimension_numbers = #tpu.dot_dimension_numbers<[1], [0], [0], [1], [0, 0, 1, 1], [], []>} : vector<8x8xbf16>, vector<8x64xbf16>, vector<8x64xf32> -> vector<8x64xf32>
    %43 = arith.truncf %42 : vector<8x64xf32> to vector<8x64xbf16>
    %44 = tpu.concatenate %21, %43 in 1 : vector<8x64xbf16>, vector<8x64xbf16> -> vector<8x128xbf16>
    %c0_25 = arith.constant 0 : index
    %c0_26 = arith.constant 0 : index
    %c0_27 = arith.constant 0 : index
    %45 = vector.load %arg6[%c0_25, %c0_26, %c0_27] : memref<1x8x128xbf16, #tpu.memory_space<vmem>>, vector<1x8x128xbf16>
    %46 = vector.shape_cast %45 : vector<1x8x128xbf16> to vector<8x128xbf16>
    %47 = vector.shape_cast %44 : vector<8x128xbf16> to vector<1x8x128xbf16>
    tpu.vector_store %arg6[%c0_25, %c0_26, %c0_27], %47 {strides = array<i32>} : memref<1x8x128xbf16, #tpu.memory_space<vmem>>, vector<1x8x128xbf16>,
    return
  }
  func.func @transform_0(%arg0: i32, %arg1: i32, %arg2: i32) -> (i32, i32, i32) {
    %c0_i32 = arith.constant 0 : i32
    return %arg0, %arg2, %arg1 : i32, i32, i32
  }
  func.func @transform_1(%arg0: i32, %arg1: i32, %arg2: i32) -> (i32, i32, i32) {
    %c1_i32 = arith.constant 1 : i32
    %0 = arith.addi %c1_i32, %arg1 : i32
    %c0_i32 = arith.constant 0 : i32
    %c0_i32_0 = arith.constant 0 : i32
    return %arg0, %c0_i32, %0 : i32, i32, i32
  }
  func.func @transform_2(%arg0: i32, %arg1: i32, %arg2: i32) -> (i32, i32, i32) {
    %c2_i32 = arith.constant 2 : i32
    %0 = arith.addi %c2_i32, %arg1 : i32
    %c0_i32 = arith.constant 0 : i32
    %c0_i32_0 = arith.constant 0 : i32
    return %arg0, %c0_i32, %0 : i32, i32, i32
  }
  func.func @transform_3(%arg0: i32, %arg1: i32, %arg2: i32) -> (i32, i32, i32) {
    %c0_i32 = arith.constant 0 : i32
    return %arg0, %arg2, %arg1 : i32, i32, i32
  }
}

module attributes {stable_mosaic.version = 11 : i64} {
  func.func @_matmul_kernel(%arg0: i32, %arg1: i32, %arg2: i32, %arg3: memref<16x32xf32, #tpu.memory_space<vmem>>, %arg4: memref<384x32xbf16, #tpu.memory_space<vmem>>, %arg5: memref<16x384xbf16, #tpu.memory_space<vmem>>, %arg6: memref<16x384xf32, #tpu.memory_space<vmem>>) attributes {dimension_semantics = [#tpu.dimension_semantics<parallel>, #tpu.dimension_semantics<parallel>, #tpu.dimension_semantics<arbitrary>], iteration_bounds = array<i64: 1, 1, 1>, scalar_prefetch = 0 : i64, scratch_operands = 1 : i64, tpu.core_type = #tpu.core_type<tc>, window_params = [{transform_indices = @transform_0, window_bounds = array<i64: 16, 32>}, {transform_indices = @transform_1, window_bounds = array<i64: 384, 32>}, {transform_indices = @transform_2, window_bounds = array<i64: 16, 384>}]} {
    %c0_i32 = arith.constant 0 : i32
    %0 = arith.cmpi eq, %arg2, %c0_i32 : i32
    %1 = arith.extui %0 : i1 to i32
    %c0_i32_0 = arith.constant 0 : i32
    %2 = arith.cmpi ne, %1, %c0_i32_0 : i32
    scf.if %2 {
      %cst_10 = arith.constant 0.000000e+00 : f32
      %13 = vector.broadcast %cst_10 : f32 to vector<16x384xf32>
      %c0_11 = arith.constant 0 : index
      %c0_12 = arith.constant 0 : index
      %14 = vector.load %arg6[%c0_11, %c0_12] : memref<16x384xf32, #tpu.memory_space<vmem>>, vector<16x384xf32>
      tpu.vector_store %arg6[%c0_11, %c0_12], %13 {strides = array<i32>} : memref<16x384xf32, #tpu.memory_space<vmem>>, vector<16x384xf32>,
    } else {
    }
    %c0 = arith.constant 0 : index
    %c0_1 = arith.constant 0 : index
    %3 = vector.load %arg3[%c0, %c0_1] : memref<16x32xf32, #tpu.memory_space<vmem>>, vector<16x32xf32>
    %c0_2 = arith.constant 0 : index
    %c0_3 = arith.constant 0 : index
    %4 = vector.load %arg4[%c0_2, %c0_3] : memref<384x32xbf16, #tpu.memory_space<vmem>>, vector<384x32xbf16>
    %5 = arith.truncf %3 : vector<16x32xf32> to vector<16x32xbf16>
    %c0_4 = arith.constant 0 : index
    %c0_5 = arith.constant 0 : index
    %6 = vector.load %arg6[%c0_4, %c0_5] : memref<16x384xf32, #tpu.memory_space<vmem>>, vector<16x384xf32>
    %cst = arith.constant dense<0.000000e+00> : vector<16x384xf32>
    %7 = tpu.matmul %5, %4, %cst {dimension_numbers = #tpu.dot_dimension_numbers<[1], [1], [0], [0], [0, 0, 1, 0], [], []>} : vector<16x32xbf16>, vector<384x32xbf16>, vector<16x384xf32> -> vector<16x384xf32>
    %8 = arith.addf %6, %7 : vector<16x384xf32>
    %c0_6 = arith.constant 0 : index
    %c0_7 = arith.constant 0 : index
    %9 = vector.load %arg6[%c0_6, %c0_7] : memref<16x384xf32, #tpu.memory_space<vmem>>, vector<16x384xf32>
    tpu.vector_store %arg6[%c0_6, %c0_7], %8 {strides = array<i32>} : memref<16x384xf32, #tpu.memory_space<vmem>>, vector<16x384xf32>,
    %c0_i32_8 = arith.constant 0 : i32
    %10 = arith.cmpi eq, %arg2, %c0_i32_8 : i32
    %11 = arith.extui %10 : i1 to i32
    %c0_i32_9 = arith.constant 0 : i32
    %12 = arith.cmpi ne, %11, %c0_i32_9 : i32
    scf.if %12 {
      %c0_10 = arith.constant 0 : index
      %c0_11 = arith.constant 0 : index
      %13 = vector.load %arg6[%c0_10, %c0_11] : memref<16x384xf32, #tpu.memory_space<vmem>>, vector<16x384xf32>
      %14 = arith.truncf %13 : vector<16x384xf32> to vector<16x384xbf16>
      %c0_12 = arith.constant 0 : index
      %c0_13 = arith.constant 0 : index
      %15 = vector.load %arg5[%c0_12, %c0_13] : memref<16x384xbf16, #tpu.memory_space<vmem>>, vector<16x384xbf16>
      tpu.vector_store %arg5[%c0_12, %c0_13], %14 {strides = array<i32>} : memref<16x384xbf16, #tpu.memory_space<vmem>>, vector<16x384xbf16>,
    } else {
    }
    return
  }
  func.func @transform_0(%arg0: i32, %arg1: i32, %arg2: i32) -> (i32, i32) {
    %c0_i32 = arith.constant 0 : i32
    return %arg0, %arg2 : i32, i32
  }
  func.func @transform_1(%arg0: i32, %arg1: i32, %arg2: i32) -> (i32, i32) {
    %c0_i32 = arith.constant 0 : i32
    return %arg1, %arg2 : i32, i32
  }
  func.func @transform_2(%arg0: i32, %arg1: i32, %arg2: i32) -> (i32, i32) {
    %c0_i32 = arith.constant 0 : i32
    return %arg0, %arg1 : i32, i32
  }
}

</mosaic_0001>

<llo_original>
// kernel: attention_forward.5
$region0: #{attention_forward.5}
  #allocation0 [shape = 'u32[]', space=smem, size = 0x4, offset = 0x4, fixed_abs, tag = 'smem constant byte address 0x4 - core index']
  #allocation1 [shape = 'u32[144,128]{1,0:T(1,128)}', space=vmem, size = 0x12000, scoped, tag = 'internal scratch']
  #allocation2 [shape = 'f32[16,32]{1,0:T(8,128)}', space=vmem, size = 0x2000, scoped, tag = 'scratch operand']
  %s0 = inlined_call_operand.vmem [shape: bf16[16,128], index: 0, kind: input, shape index: {}]
  %s1 = inlined_call_operand.vmem [shape: bf16[32,128], index: 1, kind: input, shape index: {}]
  %s2 = inlined_call_operand.vmem [shape: f32[1,32], index: 2, kind: input, shape index: {}]
  %s3 = inlined_call_operand.hbm [shape: f32[16,32], index: 3, kind: output, shape index: {}]
  %s4 = sld [smem:[#allocation0]]
  $region30: #{attention_forward.5} parent=0
    _
  %s6 = ssub.s32 1, %s4
  %s7 = scalar_select 0, %s6, %s4
  $region1: #{attention_forward.5} parent=0
    #allocation3 [shape = 'u8[8192]{0}', space=vmem, size = 0x2000, scoped, tag = 'output window, operand 0, single buffered']
    #allocation4 [shape = 's32[1]{0}', space=sflag, size = 0x4, scoped, tag = 'scoped memory for attention_forward.5']
    %8 = vsyncpa [#allocation4], 0
    // Predicated region
    $region2: #{attention_forward.5} parent=1 // pred_check
      _
    $region3: #{attention_forward.5} parent=1 // pred_check_branch
      %10 = sbr.rel (0) target = $region5
    $region4: #{attention_forward.5} parent=1 // pred_region
      _
    $region5: #{attention_forward.5} parent=1 // pred_fallthru
      _
    // Predicated region
    $region6: #{attention_forward.5} parent=1 // pred_check
      _
    $region7: #{attention_forward.5} parent=1 // pred_check_branch
      %12 = sbr.rel (0) target = $region9
    $region8: #{attention_forward.5} parent=1 // pred_region
      _
    $region9: #{attention_forward.5} parent=1 // pred_fallthru
      _
    // Predicated region
    $region10: #{attention_forward.5} parent=1 // pred_check
      _
    $region11: #{attention_forward.5} parent=1 // pred_check_branch
      %14 = sbr.rel (0) target = $region13
    $region12: #{attention_forward.5} parent=1 // pred_region
      _
    $region13: #{attention_forward.5} parent=1 // pred_fallthru
      _
    %p16 = scmp.eq.s32.totalorder 0, 0
    // Predicated region
    $region14: #{attention_forward.5} parent=1 // pred_check
      %p17 = pneg %p16
    $region15: #{attention_forward.5} parent=1 // pred_check_branch
      %19 = sbr.rel (%p17) target = $region17
    $region16: #{attention_forward.5} parent=1 // pred_region
      %vm20 = vcmask 261120
      %21 = vst.msk [vmem:[#allocation2] sm:$0xff] %vm20, 0.0
      %22 = vst.msk [vmem:[#allocation2 + $0x8] sm:$0xff] %vm20, 0.0
    $region17: #{attention_forward.5} parent=1 // pred_fallthru
      _
    %v23 = vld [vmem:[%s0] sm:$0xf]
    %v24 = vld [vmem:[%s0 + $0x4] sm:$0xf]
    %v25 = vld [vmem:[%s1] sm:$0xf]
    %v26 = vld [vmem:[%s1 + $0x4] sm:$0xf]
    %v27 = vld [vmem:[%s1 + $0x8] sm:$0xf]
    %v28 = vld [vmem:[%s1 + $0xc] sm:$0xf]
    %v29 = vld [vmem:[#allocation2] sm:$0xff]
    %v30 = vld [vmem:[#allocation2 + $0x8] sm:$0xff]
    %v33 = vunpack.c.l.b16 %v23
    %v34 = vunpack.c.l.b16 %v24
    %v35 = vpack.c.b16 %v34, %v33
    %v41 = vunpack.c.l.b16 %v25
    %v42 = vunpack.c.l.b16 %v26
    %v43 = vunpack.c.l.b16 %v27
    %v44 = vunpack.c.l.b16 %v28
    %v45 = vpack.c.b16 %v42, %v41
    %v46 = vpack.c.b16 %v44, %v43
    %49 = vmatprep.subr.bf16.mxu0 0
    %50 = vmatpush1.bf16.xpose.msra.mxu0 0
    %51 = vmatprep.subr.bf16.mxu0 0
    %52 = vmatpush1.bf16.xpose.msra.mxu0 0
    %53 = vmatprep.subr.bf16.mxu0 0
    %54 = vmatpush1.bf16.xpose.msra.mxu0 0
    %55 = vmatprep.subr.bf16.mxu0 0
    %56 = vmatpush1.bf16.xpose.msra.mxu0 0
    %57 = vmatprep.subr.bf16.mxu0 0
    %58 = vmatpush1.bf16.xpose.msra.mxu0 0
    %59 = vmatprep.subr.bf16.mxu0 0
    %60 = vmatpush1.bf16.xpose.msra.mxu0 0
    %61 = vmatprep.subr.bf16.mxu0 0
    %62 = vmatpush1.bf16.xpose.msra.mxu0 %v46
    %63 = vmatprep.subr.bf16.mxu0 0
    %64 = vmatpush1.bf16.xpose.msra.mxu0 %v45
    %65 = vmatprep.subr.bf16.mxu0 0
    %66 = vmatpush2.bf16.xpose.msra.mxu0 0
    %67 = vmatprep.subr.bf16.mxu0 0
    %68 = vmatpush2.bf16.xpose.msra.mxu0 0
    %69 = vmatprep.subr.bf16.mxu0 0
    %70 = vmatpush2.bf16.xpose.msra.mxu0 0
    %71 = vmatprep.subr.bf16.mxu0 0
    %72 = vmatpush2.bf16.xpose.msra.mxu0 0
    %73 = vmatprep.subr.bf16.mxu0 0
    %74 = vmatpush2.bf16.xpose.msra.mxu0 0
    %75 = vmatprep.subr.bf16.mxu0 0
    %76 = vmatpush2.bf16.xpose.msra.mxu0 0
    %77 = vmatprep.subr.bf16.mxu0 0
    %78 = vmatpush2.bf16.xpose.msra.mxu0 0
    %79 = vmatprep.subr.bf16.mxu0 0
    %80 = vmatpush2.bf16.xpose.msra.mxu0 0
    %81 = vmatprep.mubr.bf16.mxu0 0
    %82 = vmatmul.mubr.bf16.gmra.mxu0 %v35
    %v83 = vpop.f32.mrf.mxu0
    %v84 = vadd.f32 0.0, %v83
    %v85 = vpop.f32.mrf.mxu0
    %v86 = vpop.f32.mrf.mxu0
    %v87 = vadd.f32 0.0, %v86
    %v88 = vpop.f32.mrf.mxu0
    %89 = vdwg.mxu0
    %v90 = vadd.f32 %v29, %v84
    %v91 = vadd.f32 %v30, %v87
    %vm92 = vcmask 261120
    %93 = vst.msk [vmem:[#allocation2] sm:$0xff] %vm92, %v90
    %94 = vst.msk [vmem:[#allocation2 + $0x8] sm:$0xff] %vm92, %v91
    // Predicated region
    $region18: #{attention_forward.5} parent=1 // pred_check
      %p95 = pneg %p16
    $region19: #{attention_forward.5} parent=1 // pred_check_branch
      %97 = sbr.rel (%p95) target = $region21
    $region20: #{attention_forward.5} parent=1 // pred_region
      %v98 = vld [vmem:[#allocation2] sm:$0xff]
      %v99 = vld [vmem:[#allocation2 + $0x8] sm:$0xff]
      %v100 = vld [vmem:[%s2] sm:$0x1]
      %v102 = vlaneseq
      %v103 = vshrl.u32 %v102, 7
      %v104 = vsub.s32 0, %v103
      %v105 = vrot.slane %v100, %v104
      %v107 = vadd.f32 %v98, %v105
      %v108 = vadd.f32 %v99, %v105
      %109 = vst.msk [vmem:[#allocation3] sm:$0xff] %vm92, %v107
      %110 = vst.msk [vmem:[#allocation3 + $0x8] sm:$0xff] %vm92, %v108
    $region21: #{attention_forward.5} parent=1 // pred_fallthru
      _
    // Predicated region
    $region22: #{attention_forward.5} parent=1 // pred_check
      _
    $region23: #{attention_forward.5} parent=1 // pred_check_branch
      %112 = sbr.rel (0) target = $region25
    $region24: #{attention_forward.5} parent=1 // pred_region
      %s114 = ssub.s32 256, 256
      %115 = vsyncadd [#allocation4], %s114
      %s116 = sshll.u32 [#allocation3], 4
      %s117 = int_to_ptr.vmem [resolvable:$true] %s116
      %122 = dma.vmem_to_hbm [thread:$0]  %s117, 256, %s3, [#allocation4], 128, 128, 8
    $region25: #{attention_forward.5} parent=1 // pred_fallthru
      _
    // Predicated region
    $region26: #{attention_forward.5} parent=1 // pred_check
      _
    $region27: #{attention_forward.5} parent=1 // pred_check_branch
      %124 = sbr.rel (0) target = $region29
    $region28: #{attention_forward.5} parent=1 // pred_region
      %125 = dma.done [#allocation4], 256
    $region29: #{attention_forward.5} parent=1 // pred_fallthru
      _
    %126 = vsyncpa [#allocation4], 1

// kernel: attention_forward.4
$region0: #{attention_forward.4}
  #allocation0 [shape = 'u32[]', space=smem, size = 0x4, offset = 0x4, fixed_abs, tag = 'smem constant byte address 0x4 - core index']
  #allocation1 [shape = 'u32[144,128]{1,0:T(1,128)}', space=vmem, size = 0x12000, scoped, tag = 'internal scratch']
  %s0 = inlined_call_operand.vmem [shape: bf16[2,8,384], index: 0, kind: input, shape index: {}, may-alias: {0,1,2}]
  %s1 = inlined_call_operand.vmem [shape: bf16[2,8,384], index: 1, kind: input, shape index: {}, may-alias: {0,1,2}]
  %s2 = inlined_call_operand.vmem [shape: bf16[2,8,384], index: 2, kind: input, shape index: {}, may-alias: {0,1,2}]
  %s3 = inlined_call_operand.vmem [shape: bf16[2,8,128], index: 3, kind: output, shape index: {}]
  %s4 = sld [smem:[#allocation0]]
  $region45: #{attention_forward.4} parent=0
    _
  %s6 = ssub.s32 1, %s4
  %s7 = scalar_select 0, %s6, %s4
  loop: start=0, step=1, limit=4
  $region2: #{attention_forward.4} parent=0 // loop_pre_header
    _
  $region3: #{attention_forward.4} parent=0 // loop_header
    %s9 = sphi 0, %s13
    %p10 = scmp.ge.s32.totalorder %s9, 4
    %s16 = sphi 0, %s35
    %s17 = sphi 0, %s31
    %s18 = sphi 0, %s27
    %s19 = sphi 0, %s16
    %s20 = sphi 0, %s17
    %s21 = sphi 0, %s18
    %s22 = sphi 0, %s19
    %s23 = sphi 0, %s20
    %s24 = sphi 0, %s21
    %s42 = sphi 0, %s44
    %s45 = sphi 0, %s42
    %s46 = sphi 0, %s45
    %s62 = sphi 0, %s46
    %s72 = sphi 0, %s74
    %s75 = sphi 0, %s72
    %s76 = sphi 0, %s75
    %s92 = sphi 0, %s76
    %s102 = sphi 0, %s104
    %s105 = sphi 0, %s102
    %s106 = sphi 0, %s105
    %s122 = sphi 0, %s106
    %s132 = sphi 0, %s134
    %s135 = sphi 0, %s132
    %s136 = sphi 0, %s135
    %s152 = sphi 0, %s136
  $region4: #{attention_forward.4} parent=0 // loop_header_branch
    %12 = sbr.rel (%p10) target = $region8
  $region5: #{attention_forward.4} parent=0 // loop_body
    %s14 = ssub.s32 %s9, 1
    %s15 = ssub.s32 %s9, 2
    %s25 = sadd.s32 1, %s18
    %p26 = scmp.ge.s32.totalorder %s25, 1
    %s27 = scalar_select %p26, 0, %s25
    %s28 = sadd.s32 1, %s17
    %s29 = scalar_select %p26, %s28, %s17
    %p30 = scmp.ge.s32.totalorder %s29, 1
    %s31 = scalar_select %p30, 0, %s29
    %s32 = sadd.s32 1, %s16
    %s33 = scalar_select %p30, %s32, %s16
    %p34 = scmp.ge.s32.totalorder %s33, 2
    %s35 = scalar_select %p34, 0, %s33
    %s36 = ssub.s32 %s16, %s35
    %s37 = ssub.s32 %s18, %s27
    %s38 = sor.u32 %s36, %s37
    %s39 = ssub.s32 %s17, %s31
    %s40 = sor.u32 %s38, %s39
    %p41 = scmp.eq.s32.totalorder %s40, 0
    %s43 = sadd.s32 %s42, 1
    %s44 = scalar_select %p41, %s42, %s43
    %p47 = pneg %p41
    %p48 = scmp.eq.s32.totalorder %s9, 1
    %p49 = por %p47, %p48
    %p50 = scmp.ne.s32.totalorder %s42, %s45
    %p51 = scmp.eq.s32.totalorder %s9, 0
    %p52 = por %p50, %p51
    %p53 = scmp.ne.s32.totalorder %s42, %s45
    %p54 = scmp.eq.s32.totalorder %s14, 1
    %p55 = por %p53, %p54
    %p56 = scmp.ne.s32.totalorder %s45, %s46
    %p57 = scmp.eq.s32.totalorder %s14, 0
    %p58 = por %p56, %p57
    %p59 = scmp.ne.s32.totalorder %s45, %s46
    %p60 = scmp.eq.s32.totalorder %s15, 1
    %p61 = por %p59, %p60
    %p63 = scmp.ne.s32.totalorder %s46, %s62
    %p64 = scmp.eq.s32.totalorder %s15, 0
    %p65 = por %p63, %p64
    %s66 = sadd.s32 %s17, 1
    %s67 = sadd.s32 %s31, 1
    %s68 = ssub.s32 %s16, %s35
    %s69 = ssub.s32 %s66, %s67
    %s70 = sor.u32 %s68, %s69
    %p71 = scmp.eq.s32.totalorder %s70, 0
    %s73 = sadd.s32 %s72, 1
    %s74 = scalar_select %p71, %s72, %s73
    %p77 = pneg %p71
    %p78 = scmp.eq.s32.totalorder %s9, 1
    %p79 = por %p77, %p78
    %p80 = scmp.ne.s32.totalorder %s72, %s75
    %p81 = scmp.eq.s32.totalorder %s9, 0
    %p82 = por %p80, %p81
    %p83 = scmp.ne.s32.totalorder %s72, %s75
    %p84 = scmp.eq.s32.totalorder %s14, 1
    %p85 = por %p83, %p84
    %p86 = scmp.ne.s32.totalorder %s75, %s76
    %p87 = scmp.eq.s32.totalorder %s14, 0
    %p88 = por %p86, %p87
    %p89 = scmp.ne.s32.totalorder %s75, %s76
    %p90 = scmp.eq.s32.totalorder %s15, 1
    %p91 = por %p89, %p90
    %p93 = scmp.ne.s32.totalorder %s76, %s92
    %p94 = scmp.eq.s32.totalorder %s15, 0
    %p95 = por %p93, %p94
    %s96 = sadd.s32 %s17, 2
    %s97 = sadd.s32 %s31, 2
    %s98 = ssub.s32 %s16, %s35
    %s99 = ssub.s32 %s96, %s97
    %s100 = sor.u32 %s98, %s99
    %p101 = scmp.eq.s32.totalorder %s100, 0
    %s103 = sadd.s32 %s102, 1
    %s104 = scalar_select %p101, %s102, %s103
    %p107 = pneg %p101
    %p108 = scmp.eq.s32.totalorder %s9, 1
    %p109 = por %p107, %p108
    %p110 = scmp.ne.s32.totalorder %s102, %s105
    %p111 = scmp.eq.s32.totalorder %s9, 0
    %p112 = por %p110, %p111
    %p113 = scmp.ne.s32.totalorder %s102, %s105
    %p114 = scmp.eq.s32.totalorder %s14, 1
    %p115 = por %p113, %p114
    %p116 = scmp.ne.s32.totalorder %s105, %s106
    %p117 = scmp.eq.s32.totalorder %s14, 0
    %p118 = por %p116, %p117
    %p119 = scmp.ne.s32.totalorder %s105, %s106
    %p120 = scmp.eq.s32.totalorder %s15, 1
    %p121 = por %p119, %p120
    %p123 = scmp.ne.s32.totalorder %s106, %s122
    %p124 = scmp.eq.s32.totalorder %s15, 0
    %p125 = por %p123, %p124
    %s126 = ssub.s32 %s16, %s35
    %s127 = ssub.s32 %s18, %s27
    %s128 = sor.u32 %s126, %s127
    %s129 = ssub.s32 %s17, %s31
    %s130 = sor.u32 %s128, %s129
    %p131 = scmp.eq.s32.totalorder %s130, 0
    %s133 = sadd.s32 %s132, 1
    %s134 = scalar_select %p131, %s132, %s133
    %p137 = pneg %p131
    %p138 = scmp.eq.s32.totalorder %s9, 1
    %p139 = por %p137, %p138
    %p140 = scmp.ne.s32.totalorder %s132, %s135
    %p141 = scmp.eq.s32.totalorder %s9, 0
    %p142 = por %p140, %p141
    %p143 = scmp.ne.s32.totalorder %s132, %s135
    %p144 = scmp.eq.s32.totalorder %s14, 1
    %p145 = por %p143, %p144
    %p146 = scmp.ne.s32.totalorder %s135, %s136
    %p147 = scmp.eq.s32.totalorder %s14, 0
    %p148 = por %p146, %p147
    %p149 = scmp.ne.s32.totalorder %s135, %s136
    %p150 = scmp.eq.s32.totalorder %s15, 1
    %p151 = por %p149, %p150
    %p153 = scmp.ne.s32.totalorder %s136, %s152
    %p154 = scmp.eq.s32.totalorder %s15, 0
    %p155 = por %p153, %p154
    %p156 = scmp.le.s32.totalorder 1, %s9
    %p157 = scmp.lt.s32.totalorder %s9, 3
    %p158 = pnand %p156, %p157
    %p159 = pneg %p158
    // Predicated region
    $region9: #{attention_forward.4} parent=5 // pred_check
      _
    $region10: #{attention_forward.4} parent=5 // pred_check_branch
      %161 = sbr.rel (%p158) target = $region12
    $region11: #{attention_forward.4} parent=5 // pred_region
      %s162 = ssub.s32 %s9, 1
    $region12: #{attention_forward.4} parent=5 // pred_fallthru
      _
    %p163 = scmp.lt.s32.totalorder %s9, 2
    // Predicated region
    $region13: #{attention_forward.4} parent=5 // pred_check
      %p164 = pneg %p163
    $region14: #{attention_forward.4} parent=5 // pred_check_branch
      %166 = sbr.rel (%p164) target = $region16
    $region15: #{attention_forward.4} parent=5 // pred_region
      // Predicated region
      $region17: #{attention_forward.4} parent=15 // pred_check
        %p167 = pneg %p52
      $region18: #{attention_forward.4} parent=15 // pred_check_branch
        %169 = sbr.rel (%p167) target = $region20
      $region19: #{attention_forward.4} parent=15 // pred_region
        %p170 = scmp.lt.s32.totalorder %s16, 1
        %s171 = scalar_select %p170, %s16, 1
        %p172 = scmp.lt.s32.totalorder %s18, 0
        %s173 = scalar_select %p172, %s18, 0
        %p174 = scmp.lt.s32.totalorder %s17, 2
        %s175 = scalar_select %p174, %s17, 2
        %s176 = smul.addr %s173, 3
        %s177 = sadd.s32 %s175, %s176
        %s178 = smul.addr %s171, 3
        %s179 = sadd.s32 %s177, %s178
        %s180 = smul.addr %s179, 4
        %s181 = scalar_lea.vmem %s0, %s180
      $region20: #{attention_forward.4} parent=15 // pred_fallthru
        _
      // Predicated region
      $region21: #{attention_forward.4} parent=15 // pred_check
        %p182 = pneg %p82
      $region22: #{attention_forward.4} parent=15 // pred_check_branch
        %184 = sbr.rel (%p182) target = $region24
      $region23: #{attention_forward.4} parent=15 // pred_region
        %s185 = sadd.s32 %s17, 1
        %p186 = scmp.lt.s32.totalorder %s16, 1
        %s187 = scalar_select %p186, %s16, 1
        %p188 = scmp.lt.s32.totalorder %s185, 2
        %s189 = scalar_select %p188, %s185, 2
        %s190 = smul.addr %s187, 3
        %s191 = sadd.s32 %s189, %s190
        %s192 = smul.addr %s191, 4
        %s193 = scalar_lea.vmem %s1, %s192
        %s194 = sadd.s32 %s17, 1
      $region24: #{attention_forward.4} parent=15 // pred_fallthru
        _
      // Predicated region
      $region25: #{attention_forward.4} parent=15 // pred_check
        %p195 = pneg %p112
      $region26: #{attention_forward.4} parent=15 // pred_check_branch
        %197 = sbr.rel (%p195) target = $region28
      $region27: #{attention_forward.4} parent=15 // pred_region
        %s198 = sadd.s32 %s17, 2
        %p199 = scmp.lt.s32.totalorder %s16, 1
        %s200 = scalar_select %p199, %s16, 1
        %p201 = scmp.lt.s32.totalorder %s198, 2
        %s202 = scalar_select %p201, %s198, 2
        %s203 = smul.addr %s200, 3
        %s204 = sadd.s32 %s202, %s203
        %s205 = smul.addr %s204, 4
        %s206 = scalar_lea.vmem %s2, %s205
        %s207 = sadd.s32 %s17, 2
      $region28: #{attention_forward.4} parent=15 // pred_fallthru
        _
    $region16: #{attention_forward.4} parent=5 // pred_fallthru
      _
    %p208 = scmp.le.s32.totalorder 1, %s9
    %p209 = scmp.lt.s32.totalorder %s9, 3
    %p210 = pnand %p208, %p209
    %p211 = pneg %p210
    // Predicated region
    $region29: #{attention_forward.4} parent=5 // pred_check
      _
    $region30: #{attention_forward.4} parent=5 // pred_check_branch
      %213 = sbr.rel (%p210) target = $region32
    $region31: #{attention_forward.4} parent=5 // pred_region
      %s214 = ssub.s32 %s9, 1
      %p215 = scmp.lt.s32.totalorder %s19, 1
      %s216 = scalar_select %p215, %s19, 1
      %p217 = scmp.lt.s32.totalorder %s21, 0
      %s218 = scalar_select %p217, %s21, 0
      %p219 = scmp.lt.s32.totalorder %s20, 2
      %s220 = scalar_select %p219, %s20, 2
      %s221 = smul.addr %s218, 3
      %s222 = sadd.s32 %s220, %s221
      %s223 = smul.addr %s216, 3
      %s224 = sadd.s32 %s222, %s223
      %s225 = smul.addr %s224, 4
      %s226 = scalar_lea.vmem %s0, %s225
      %p227 = pneg %p58
      %p228 = pneg %p55
      %s229 = sadd.s32 %s20, 1
      %p230 = scmp.lt.s32.totalorder %s19, 1
      %s231 = scalar_select %p230, %s19, 1
      %p232 = scmp.lt.s32.totalorder %s229, 2
      %s233 = scalar_select %p232, %s229, 2
      %s234 = smul.addr %s231, 3
      %s235 = sadd.s32 %s233, %s234
      %s236 = smul.addr %s235, 4
      %s237 = scalar_lea.vmem %s1, %s236
      %p238 = pneg %p88
      %p239 = pneg %p85
      %s240 = sadd.s32 %s20, 2
      %p241 = scmp.lt.s32.totalorder %s19, 1
      %s242 = scalar_select %p241, %s19, 1
      %p243 = scmp.lt.s32.totalorder %s240, 2
      %s244 = scalar_select %p243, %s240, 2
      %s245 = smul.addr %s242, 3
      %s246 = sadd.s32 %s244, %s245
      %s247 = smul.addr %s246, 4
      %s248 = scalar_lea.vmem %s2, %s247
      %p249 = pneg %p118
      %p250 = pneg %p115
      %p251 = pneg %p148
      %p252 = pneg %p145
      %p253 = scmp.lt.s32.totalorder %s19, 1
      %s254 = scalar_select %p253, %s19, 1
      %p255 = scmp.lt.s32.totalorder %s21, 0
      %s256 = scalar_select %p255, %s21, 0
      %p257 = scmp.lt.s32.totalorder %s20, 0
      %s258 = scalar_select %p257, %s20, 0
      %s259 = sadd.s32 %s258, %s256
      %s260 = sadd.s32 %s259, %s254
      %s261 = smul.addr %s260, 4
      %s262 = scalar_lea.vmem %s3, %s261
      %p263 = scmp.lt.s32.totalorder %s19, 1
      %s264 = scalar_select %p263, %s19, 1
      %p265 = scmp.lt.s32.totalorder %s21, 0
      %s266 = scalar_select %p265, %s21, 0
      %p267 = scmp.lt.s32.totalorder %s20, 2
      %s268 = scalar_select %p267, %s20, 2
      %s269 = smul.addr %s266, 3
      %s270 = sadd.s32 %s268, %s269
      %s271 = smul.addr %s264, 3
      %s272 = sadd.s32 %s270, %s271
      %s273 = smul.addr %s272, 4
      %s274 = scalar_lea.vmem %s0, %s273
      %s275 = sadd.s32 %s20, 1
      %p276 = scmp.lt.s32.totalorder %s19, 1
      %s277 = scalar_select %p276, %s19, 1
      %p278 = scmp.lt.s32.totalorder %s275, 2
      %s279 = scalar_select %p278, %s275, 2
      %s280 = smul.addr %s277, 3
      %s281 = sadd.s32 %s279, %s280
      %s282 = smul.addr %s281, 4
      %s283 = scalar_lea.vmem %s1, %s282
      %s284 = sadd.s32 %s20, 1
      %s285 = sadd.s32 %s20, 2
      %p286 = scmp.lt.s32.totalorder %s19, 1
      %s287 = scalar_select %p286, %s19, 1
      %p288 = scmp.lt.s32.totalorder %s285, 2
      %s289 = scalar_select %p288, %s285, 2
      %s290 = smul.addr %s287, 3
      %s291 = sadd.s32 %s289, %s290
      %s292 = smul.addr %s291, 4
      %s293 = scalar_lea.vmem %s2, %s292
      %s294 = sadd.s32 %s20, 2
      %p295 = scmp.lt.s32.totalorder %s19, 1
      %s296 = scalar_select %p295, %s19, 1
      %p297 = scmp.lt.s32.totalorder %s21, 0
      %s298 = scalar_select %p297, %s21, 0
      %p299 = scmp.lt.s32.totalorder %s20, 0
      %s300 = scalar_select %p299, %s20, 0
      %s301 = sadd.s32 %s300, %s298
      %s302 = sadd.s32 %s301, %s296
      %s303 = smul.addr %s302, 4
      %s304 = scalar_lea.vmem %s3, %s303
      %v307 = vld [vmem:[%s274] sm:$0xf]
      %v308 = vmul.bf16 %v307, 1040203264
      %v309 = vld [vmem:[%s283] sm:$0xf]
      %v310 = vld [vmem:[%s293] sm:$0xf]
      %vm311 = vcmask 523264
      %v313 = vsel %vm311, %v308, 0
      %v316 = vsel %vm311, %v309, 0
      %318 = vmatprep.subr.bf16.mxu0 0
      %319 = vmatpush1.bf16.xpose.msra.mxu0 0
      %320 = vmatprep.subr.bf16.mxu0 0
      %321 = vmatpush1.bf16.xpose.msra.mxu0 0
      %322 = vmatprep.subr.bf16.mxu0 0
      %323 = vmatpush1.bf16.xpose.msra.mxu0 0
      %324 = vmatprep.subr.bf16.mxu0 0
      %325 = vmatpush1.bf16.xpose.msra.mxu0 0
      %326 = vmatprep.subr.bf16.mxu0 0
      %327 = vmatpush1.bf16.xpose.msra.mxu0 0
      %328 = vmatprep.subr.bf16.mxu0 0
      %329 = vmatpush1.bf16.xpose.msra.mxu0 0
      %330 = vmatprep.subr.bf16.mxu0 0
      %331 = vmatpush1.bf16.xpose.msra.mxu0 0
      %332 = vmatprep.subr.bf16.mxu0 0
      %333 = vmatpush1.bf16.xpose.msra.mxu0 %v316
      %334 = vmatprep.subr.bf16.mxu0 0
      %335 = vmatpush2.bf16.xpose.msra.mxu0 0
      %336 = vmatprep.subr.bf16.mxu0 0
      %337 = vmatpush2.bf16.xpose.msra.mxu0 0
      %338 = vmatprep.subr.bf16.mxu0 0
      %339 = vmatpush2.bf16.xpose.msra.mxu0 0
      %340 = vmatprep.subr.bf16.mxu0 0
      %341 = vmatpush2.bf16.xpose.msra.mxu0 0
      %342 = vmatprep.subr.bf16.mxu0 0
      %343 = vmatpush2.bf16.xpose.msra.mxu0 0
      %344 = vmatprep.subr.bf16.mxu0 0
      %345 = vmatpush2.bf16.xpose.msra.mxu0 0
      %346 = vmatprep.subr.bf16.mxu0 0
      %347 = vmatpush2.bf16.xpose.msra.mxu0 0
      %348 = vmatprep.subr.bf16.mxu0 0
      %349 = vmatpush2.bf16.xpose.msra.mxu0 0
      %350 = vmatprep.mubr.bf16.mxu0 0
      %351 = vmatmul.mubr.bf16.gmra.mxu0 %v313
      %v352 = vpop.f32.mrf.mxu0
      %v353 = vadd.f32 0.0, %v352
      %v354 = vpop.f32.mrf.mxu0
      %v355 = vpop.f32.mrf.mxu0
      %v356 = vpop.f32.mrf.mxu0
      %357 = vdwg.mxu0
      %vm358 = vcmask 64512
      %v359 = vsel %vm358, %v353, -inf
      %360 = vmax.xlane.f32.xlu0 %v359
      %v361 = vpop.xlane.xlu0 %360
      %v362 = vsub.f32 %v353, %v361
      %v363 = vmul.f32 %v362, 1.442695
      %v364 = vpow.pop %v363
      %v365 = vsel %vm358, %v364, 0.0
      %366 = vadd.xlane.f32.xlu0 %v365
      %v367 = vpop.xlane.xlu0 %366
      %v368 = vrcp.pop %v367
      %v369 = vmul.f32 %v364, %v368
      %v370 = vpack.c.bf16 %v369, %v369
      %v372 = vsel %vm358, %v370, 0
      %vm374 = vcmask 1043456
      %v376 = vsel %vm374, %v310, 0
      %378 = vmatprep.subr.bf16.mxu0 0
      %379 = vmatpush1.bf16.msra.mxu0 0
      %380 = vmatprep.subr.bf16.mxu0 0
      %381 = vmatpush1.bf16.msra.mxu0 0
      %382 = vmatprep.subr.bf16.mxu0 0
      %383 = vmatpush1.bf16.msra.mxu0 0
      %384 = vmatprep.subr.bf16.mxu0 0
      %385 = vmatpush1.bf16.msra.mxu0 0
      %386 = vmatprep.subr.bf16.mxu0 0
      %387 = vmatpush1.bf16.msra.mxu0 0
      %388 = vmatprep.subr.bf16.mxu0 0
      %389 = vmatpush1.bf16.msra.mxu0 0
      %390 = vmatprep.subr.bf16.mxu0 0
      %391 = vmatpush1.bf16.msra.mxu0 0
      %392 = vmatprep.subr.bf16.mxu0 0
      %393 = vmatpush1.bf16.msra.mxu0 %v376
      %394 = vmatprep.subr.bf16.mxu0 0
      %395 = vmatpush2.bf16.msra.mxu0 0
      %396 = vmatprep.subr.bf16.mxu0 0
      %397 = vmatpush2.bf16.msra.mxu0 0
      %398 = vmatprep.subr.bf16.mxu0 0
      %399 = vmatpush2.bf16.msra.mxu0 0
      %400 = vmatprep.subr.bf16.mxu0 0
      %401 = vmatpush2.bf16.msra.mxu0 0
      %402 = vmatprep.subr.bf16.mxu0 0
      %403 = vmatpush2.bf16.msra.mxu0 0
      %404 = vmatprep.subr.bf16.mxu0 0
      %405 = vmatpush2.bf16.msra.mxu0 0
      %406 = vmatprep.subr.bf16.mxu0 0
      %407 = vmatpush2.bf16.msra.mxu0 0
      %408 = vmatprep.subr.bf16.mxu0 0
      %409 = vmatpush2.bf16.msra.mxu0 0
      %410 = vmatprep.mubr.bf16.mxu0 0
      %411 = vmatmul.mubr.bf16.gmra.mxu0 %v372
      %v412 = vpop.f32.mrf.mxu0
      %v413 = vadd.f32 0.0, %v412
      %v414 = vpop.f32.mrf.mxu0
      %v415 = vpop.f32.mrf.mxu0
      %v416 = vpop.f32.mrf.mxu0
      %417 = vdwg.mxu0
      %v418 = vpack.c.bf16 %v413, %v413
      %v420 = vunpack.c.l.b16 %v308
      %v421 = vpack.c.b16 %v420, %v420
      %422 = vrot.lane.b32.xlu0 %v421, 64
      %v423 = vpop.permute.xlu0 %422
      %v425 = vunpack.c.l.b16 %v309
      %v426 = vpack.c.b16 %v425, %v425
      %427 = vrot.lane.b32.xlu0 %v426, 64
      %v428 = vpop.permute.xlu0 %427
      %v430 = vsel %vm311, %v423, 0
      %v433 = vsel %vm311, %v428, 0
      %435 = vmatprep.subr.bf16.mxu0 0
      %436 = vmatpush1.bf16.xpose.msra.mxu0 0
      %437 = vmatprep.subr.bf16.mxu0 0
      %438 = vmatpush1.bf16.xpose.msra.mxu0 0
      %439 = vmatprep.subr.bf16.mxu0 0
      %440 = vmatpush1.bf16.xpose.msra.mxu0 0
      %441 = vmatprep.subr.bf16.mxu0 0
      %442 = vmatpush1.bf16.xpose.msra.mxu0 0
      %443 = vmatprep.subr.bf16.mxu0 0
      %444 = vmatpush1.bf16.xpose.msra.mxu0 0
      %445 = vmatprep.subr.bf16.mxu0 0
      %446 = vmatpush1.bf16.xpose.msra.mxu0 0
      %447 = vmatprep.subr.bf16.mxu0 0
      %448 = vmatpush1.bf16.xpose.msra.mxu0 0
      %449 = vmatprep.subr.bf16.mxu0 0
      %450 = vmatpush1.bf16.xpose.msra.mxu0 %v433
      %451 = vmatprep.subr.bf16.mxu0 0
      %452 = vmatpush2.bf16.xpose.msra.mxu0 0
      %453 = vmatprep.subr.bf16.mxu0 0
      %454 = vmatpush2.bf16.xpose.msra.mxu0 0
      %455 = vmatprep.subr.bf16.mxu0 0
      %456 = vmatpush2.bf16.xpose.msra.mxu0 0
      %457 = vmatprep.subr.bf16.mxu0 0
      %458 = vmatpush2.bf16.xpose.msra.mxu0 0
      %459 = vmatprep.subr.bf16.mxu0 0
      %460 = vmatpush2.bf16.xpose.msra.mxu0 0
      %461 = vmatprep.subr.bf16.mxu0 0
      %462 = vmatpush2.bf16.xpose.msra.mxu0 0
      %463 = vmatprep.subr.bf16.mxu0 0
      %464 = vmatpush2.bf16.xpose.msra.mxu0 0
      %465 = vmatprep.subr.bf16.mxu0 0
      %466 = vmatpush2.bf16.xpose.msra.mxu0 0
      %467 = vmatprep.mubr.bf16.mxu0 0
      %468 = vmatmul.mubr.bf16.gmra.mxu0 %v430
      %v469 = vpop.f32.mrf.mxu0
      %v470 = vadd.f32 0.0, %v469
      %v471 = vpop.f32.mrf.mxu0
      %v472 = vpop.f32.mrf.mxu0
      %v473 = vpop.f32.mrf.mxu0
      %474 = vdwg.mxu0
      %v475 = vsel %vm358, %v470, -inf
      %476 = vmax.xlane.f32.xlu0 %v475
      %v477 = vpop.xlane.xlu0 %476
      %v478 = vsub.f32 %v470, %v477
      %v479 = vmul.f32 %v478, 1.442695
      %v480 = vpow.pop %v479
      %v481 = vsel %vm358, %v480, 0.0
      %482 = vadd.xlane.f32.xlu0 %v481
      %v483 = vpop.xlane.xlu0 %482
      %v484 = vrcp.pop %v483
      %v485 = vmul.f32 %v480, %v484
      %v486 = vpack.c.bf16 %v485, %v485
      %v488 = vunpack.c.l.b16 %v310
      %v489 = vpack.c.b16 %v488, %v488
      %490 = vrot.lane.b32.xlu0 %v489, 64
      %v491 = vpop.permute.xlu0 %490
      %v493 = vsel %vm358, %v486, 0
      %v496 = vsel %vm374, %v491, 0
      %498 = vmatprep.subr.bf16.mxu0 0
      %499 = vmatpush1.bf16.msra.mxu0 0
      %500 = vmatprep.subr.bf16.mxu0 0
      %501 = vmatpush1.bf16.msra.mxu0 0
      %502 = vmatprep.subr.bf16.mxu0 0
      %503 = vmatpush1.bf16.msra.mxu0 0
      %504 = vmatprep.subr.bf16.mxu0 0
      %505 = vmatpush1.bf16.msra.mxu0 0
      %506 = vmatprep.subr.bf16.mxu0 0
      %507 = vmatpush1.bf16.msra.mxu0 0
      %508 = vmatprep.subr.bf16.mxu0 0
      %509 = vmatpush1.bf16.msra.mxu0 0
      %510 = vmatprep.subr.bf16.mxu0 0
      %511 = vmatpush1.bf16.msra.mxu0 0
      %512 = vmatprep.subr.bf16.mxu0 0
      %513 = vmatpush1.bf16.msra.mxu0 %v496
      %514 = vmatprep.subr.bf16.mxu0 0
      %515 = vmatpush2.bf16.msra.mxu0 0
      %516 = vmatprep.subr.bf16.mxu0 0
      %517 = vmatpush2.bf16.msra.mxu0 0
      %518 = vmatprep.subr.bf16.mxu0 0
      %519 = vmatpush2.bf16.msra.mxu0 0
      %520 = vmatprep.subr.bf16.mxu0 0
      %521 = vmatpush2.bf16.msra.mxu0 0
      %522 = vmatprep.subr.bf16.mxu0 0
      %523 = vmatpush2.bf16.msra.mxu0 0
      %524 = vmatprep.subr.bf16.mxu0 0
      %525 = vmatpush2.bf16.msra.mxu0 0
      %526 = vmatprep.subr.bf16.mxu0 0
      %527 = vmatpush2.bf16.msra.mxu0 0
      %528 = vmatprep.subr.bf16.mxu0 0
      %529 = vmatpush2.bf16.msra.mxu0 0
      %530 = vmatprep.mubr.bf16.mxu0 0
      %531 = vmatmul.mubr.bf16.gmra.mxu0 %v493
      %v532 = vpop.f32.mrf.mxu0
      %v533 = vadd.f32 0.0, %v532
      %v534 = vpop.f32.mrf.mxu0
      %v535 = vpop.f32.mrf.mxu0
      %v536 = vpop.f32.mrf.mxu0
      %537 = vdwg.mxu0
      %v538 = vpack.c.bf16 %v533, %v533
      %540 = vrot.lane.b32.xlu0 %v538, 64
      %v541 = vpop.permute.xlu0 %540
      %v544 = vsel %vm311, %v418, %v541
      %546 = vst [vmem:[%s304] sm:$0xf] %v544
      %p547 = scmp.lt.s32.totalorder %s19, 1
      %s548 = scalar_select %p547, %s19, 1
      %p549 = scmp.lt.s32.totalorder %s21, 0
      %s550 = scalar_select %p549, %s21, 0
      %p551 = scmp.lt.s32.totalorder %s20, 0
      %s552 = scalar_select %p551, %s20, 0
      %s553 = sadd.s32 %s552, %s550
      %s554 = sadd.s32 %s553, %s548
      %s555 = smul.addr %s554, 4
      %s556 = scalar_lea.vmem %s3, %s555
      // Predicated region
      $region33: #{attention_forward.4} parent=31 // pred_check
        %p557 = pneg %p145
      $region34: #{attention_forward.4} parent=31 // pred_check_branch
        %559 = sbr.rel (%p557) target = $region36
      $region35: #{attention_forward.4} parent=31 // pred_region
        _
      $region36: #{attention_forward.4} parent=31 // pred_fallthru
        _
    $region32: #{attention_forward.4} parent=5 // pred_fallthru
      _
    %p560 = scmp.le.s32.totalorder 2, %s9
    // Predicated region
    $region37: #{attention_forward.4} parent=5 // pred_check
      %p561 = pneg %p560
    $region38: #{attention_forward.4} parent=5 // pred_check_branch
      %563 = sbr.rel (%p561) target = $region40
    $region39: #{attention_forward.4} parent=5 // pred_region
      %s564 = ssub.s32 %s9, 2
      // Predicated region
      $region41: #{attention_forward.4} parent=39 // pred_check
        %p565 = pneg %p151
      $region42: #{attention_forward.4} parent=39 // pred_check_branch
        %567 = sbr.rel (%p565) target = $region44
      $region43: #{attention_forward.4} parent=39 // pred_region
        %p568 = scmp.lt.s32.totalorder %s22, 1
        %s569 = scalar_select %p568, %s22, 1
        %p570 = scmp.lt.s32.totalorder %s24, 0
        %s571 = scalar_select %p570, %s24, 0
        %p572 = scmp.lt.s32.totalorder %s23, 0
        %s573 = scalar_select %p572, %s23, 0
        %s574 = sadd.s32 %s573, %s571
        %s575 = sadd.s32 %s574, %s569
        %s576 = smul.addr %s575, 4
        %s577 = scalar_lea.vmem %s3, %s576
      $region44: #{attention_forward.4} parent=39 // pred_fallthru
        _
    $region40: #{attention_forward.4} parent=5 // pred_fallthru
      _
  $region6: #{attention_forward.4} parent=0 // loop_footer
    %s13 = sadd.s32 1, %s9
  $region7: #{attention_forward.4} parent=0 // loop_footer_branch
    %8 = sbr.rel target = $region3
  $region8: #{attention_forward.4} parent=0 // loop_exit
    _

// kernel: attention_forward.3
$region0: #{attention_forward.3}
  #allocation0 [shape = 'u32[]', space=smem, size = 0x4, offset = 0x4, fixed_abs, tag = 'smem constant byte address 0x4 - core index']
  #allocation1 [shape = 'u32[144,128]{1,0:T(1,128)}', space=vmem, size = 0x12000, scoped, tag = 'internal scratch']
  #allocation2 [shape = 'f32[16,384]{1,0:T(8,128)}', space=vmem, size = 0x6000, scoped, tag = 'scratch operand']
  %s0 = inlined_call_operand.vmem [shape: f32[16,32], index: 0, kind: input, shape index: {}]
  %s1 = inlined_call_operand.vmem [shape: bf16[384,32], index: 1, kind: input, shape index: {}]
  %s2 = inlined_call_operand.vmem [shape: bf16[16,384], index: 2, kind: output, shape index: {}]
  %s3 = sld [smem:[#allocation0]]
  $region26: #{attention_forward.3} parent=0
    _
  %s5 = ssub.s32 1, %s3
  %s6 = scalar_select 0, %s5, %s3
  // Predicated region
  $region2: #{attention_forward.3} parent=0 // pred_check
    _
  $region3: #{attention_forward.3} parent=0 // pred_check_branch
    %8 = sbr.rel (0) target = $region5
  $region4: #{attention_forward.3} parent=0 // pred_region
    _
  $region5: #{attention_forward.3} parent=0 // pred_fallthru
    _
  // Predicated region
  $region6: #{attention_forward.3} parent=0 // pred_check
    _
  $region7: #{attention_forward.3} parent=0 // pred_check_branch
    %10 = sbr.rel (0) target = $region9
  $region8: #{attention_forward.3} parent=0 // pred_region
    _
  $region9: #{attention_forward.3} parent=0 // pred_fallthru
    _
  %p12 = scmp.eq.s32.totalorder 0, 0
  // Predicated region
  $region10: #{attention_forward.3} parent=0 // pred_check
    %p13 = pneg %p12
  $region11: #{attention_forward.3} parent=0 // pred_check_branch
    %15 = sbr.rel (%p13) target = $region13
  $region12: #{attention_forward.3} parent=0 // pred_region
    %16 = vst [vmem:[#allocation2] sm:$0xff] 0.0
    %17 = vst [vmem:[#allocation2 + $0x8] sm:$0xff] 0.0
    %18 = vst [vmem:[#allocation2 + $0x10] sm:$0xff] 0.0
    %19 = vst [vmem:[#allocation2 + $0x18] sm:$0xff] 0.0
    %20 = vst [vmem:[#allocation2 + $0x20] sm:$0xff] 0.0
    %21 = vst [vmem:[#allocation2 + $0x28] sm:$0xff] 0.0
  $region13: #{attention_forward.3} parent=0 // pred_fallthru
    _
  %v22 = vld [vmem:[%s0] sm:$0xff]
  %v23 = vld [vmem:[%s0 + $0x8] sm:$0xff]
  %v24 = vld [vmem:[%s1] sm:$0xf]
  %v25 = vld [vmem:[%s1 + $0x4] sm:$0xf]
  %v26 = vld [vmem:[%s1 + $0x8] sm:$0xf]
  %v27 = vld [vmem:[%s1 + $0xc] sm:$0xf]
  %v28 = vld [vmem:[%s1 + $0x10] sm:$0xf]
  %v29 = vld [vmem:[%s1 + $0x14] sm:$0xf]
  %v30 = vld [vmem:[%s1 + $0x18] sm:$0xf]
  %v31 = vld [vmem:[%s1 + $0x1c] sm:$0xf]
  %v32 = vld [vmem:[%s1 + $0x20] sm:$0xf]
  %v33 = vld [vmem:[%s1 + $0x24] sm:$0xf]
  %v34 = vld [vmem:[%s1 + $0x28] sm:$0xf]
  %v35 = vld [vmem:[%s1 + $0x2c] sm:$0xf]
  %v36 = vld [vmem:[%s1 + $0x30] sm:$0xf]
  %v37 = vld [vmem:[%s1 + $0x34] sm:$0xf]
  %v38 = vld [vmem:[%s1 + $0x38] sm:$0xf]
  %v39 = vld [vmem:[%s1 + $0x3c] sm:$0xf]
  %v40 = vld [vmem:[%s1 + $0x40] sm:$0xf]
  %v41 = vld [vmem:[%s1 + $0x44] sm:$0xf]
  %v42 = vld [vmem:[%s1 + $0x48] sm:$0xf]
  %v43 = vld [vmem:[%s1 + $0x4c] sm:$0xf]
  %v44 = vld [vmem:[%s1 + $0x50] sm:$0xf]
  %v45 = vld [vmem:[%s1 + $0x54] sm:$0xf]
  %v46 = vld [vmem:[%s1 + $0x58] sm:$0xf]
  %v47 = vld [vmem:[%s1 + $0x5c] sm:$0xf]
  %v48 = vld [vmem:[%s1 + $0x60] sm:$0xf]
  %v49 = vld [vmem:[%s1 + $0x64] sm:$0xf]
  %v50 = vld [vmem:[%s1 + $0x68] sm:$0xf]
  %v51 = vld [vmem:[%s1 + $0x6c] sm:$0xf]
  %v52 = vld [vmem:[%s1 + $0x70] sm:$0xf]
  %v53 = vld [vmem:[%s1 + $0x74] sm:$0xf]
  %v54 = vld [vmem:[%s1 + $0x78] sm:$0xf]
  %v55 = vld [vmem:[%s1 + $0x7c] sm:$0xf]
  %v56 = vld [vmem:[%s1 + $0x80] sm:$0xf]
  %v57 = vld [vmem:[%s1 + $0x84] sm:$0xf]
  %v58 = vld [vmem:[%s1 + $0x88] sm:$0xf]
  %v59 = vld [vmem:[%s1 + $0x8c] sm:$0xf]
  %v60 = vld [vmem:[%s1 + $0x90] sm:$0xf]
  %v61 = vld [vmem:[%s1 + $0x94] sm:$0xf]
  %v62 = vld [vmem:[%s1 + $0x98] sm:$0xf]
  %v63 = vld [vmem:[%s1 + $0x9c] sm:$0xf]
  %v64 = vld [vmem:[%s1 + $0xa0] sm:$0xf]
  %v65 = vld [vmem:[%s1 + $0xa4] sm:$0xf]
  %v66 = vld [vmem:[%s1 + $0xa8] sm:$0xf]
  %v67 = vld [vmem:[%s1 + $0xac] sm:$0xf]
  %v68 = vld [vmem:[%s1 + $0xb0] sm:$0xf]
  %v69 = vld [vmem:[%s1 + $0xb4] sm:$0xf]
  %v70 = vld [vmem:[%s1 + $0xb8] sm:$0xf]
  %v71 = vld [vmem:[%s1 + $0xbc] sm:$0xf]
  %v72 = vpack.c.bf16 %v23, %v22
  %v73 = vld [vmem:[#allocation2] sm:$0xff]
  %v74 = vld [vmem:[#allocation2 + $0x8] sm:$0xff]
  %v75 = vld [vmem:[#allocation2 + $0x10] sm:$0xff]
  %v76 = vld [vmem:[#allocation2 + $0x18] sm:$0xff]
  %v77 = vld [vmem:[#allocation2 + $0x20] sm:$0xff]
  %v78 = vld [vmem:[#allocation2 + $0x28] sm:$0xff]
  %v127 = vunpack.c.l.b16 %v24
  %v128 = vunpack.c.l.b16 %v25
  %v129 = vunpack.c.l.b16 %v26
  %v130 = vunpack.c.l.b16 %v27
  %v131 = vunpack.c.l.b16 %v28
  %v132 = vunpack.c.l.b16 %v29
  %v133 = vunpack.c.l.b16 %v30
  %v134 = vunpack.c.l.b16 %v31
  %v135 = vunpack.c.l.b16 %v32
  %v136 = vunpack.c.l.b16 %v33
  %v137 = vunpack.c.l.b16 %v34
  %v138 = vunpack.c.l.b16 %v35
  %v139 = vunpack.c.l.b16 %v36
  %v140 = vunpack.c.l.b16 %v37
  %v141 = vunpack.c.l.b16 %v38
  %v142 = vunpack.c.l.b16 %v39
  %v143 = vunpack.c.l.b16 %v40
  %v144 = vunpack.c.l.b16 %v41
  %v145 = vunpack.c.l.b16 %v42
  %v146 = vunpack.c.l.b16 %v43
  %v147 = vunpack.c.l.b16 %v44
  %v148 = vunpack.c.l.b16 %v45
  %v149 = vunpack.c.l.b16 %v46
  %v150 = vunpack.c.l.b16 %v47
  %v151 = vunpack.c.l.b16 %v48
  %v152 = vunpack.c.l.b16 %v49
  %v153 = vunpack.c.l.b16 %v50
  %v154 = vunpack.c.l.b16 %v51
  %v155 = vunpack.c.l.b16 %v52
  %v156 = vunpack.c.l.b16 %v53
  %v157 = vunpack.c.l.b16 %v54
  %v158 = vunpack.c.l.b16 %v55
  %v159 = vunpack.c.l.b16 %v56
  %v160 = vunpack.c.l.b16 %v57
  %v161 = vunpack.c.l.b16 %v58
  %v162 = vunpack.c.l.b16 %v59
  %v163 = vunpack.c.l.b16 %v60
  %v164 = vunpack.c.l.b16 %v61
  %v165 = vunpack.c.l.b16 %v62
  %v166 = vunpack.c.l.b16 %v63
  %v167 = vunpack.c.l.b16 %v64
  %v168 = vunpack.c.l.b16 %v65
  %v169 = vunpack.c.l.b16 %v66
  %v170 = vunpack.c.l.b16 %v67
  %v171 = vunpack.c.l.b16 %v68
  %v172 = vunpack.c.l.b16 %v69
  %v173 = vunpack.c.l.b16 %v70
  %v174 = vunpack.c.l.b16 %v71
  %v175 = vpack.c.b16 %v128, %v127
  %v176 = vpack.c.b16 %v130, %v129
  %v177 = vpack.c.b16 %v132, %v131
  %v178 = vpack.c.b16 %v134, %v133
  %v179 = vpack.c.b16 %v136, %v135
  %v180 = vpack.c.b16 %v138, %v137
  %v181 = vpack.c.b16 %v140, %v139
  %v182 = vpack.c.b16 %v142, %v141
  %v183 = vpack.c.b16 %v144, %v143
  %v184 = vpack.c.b16 %v146, %v145
  %v185 = vpack.c.b16 %v148, %v147
  %v186 = vpack.c.b16 %v150, %v149
  %v187 = vpack.c.b16 %v152, %v151
  %v188 = vpack.c.b16 %v154, %v153
  %v189 = vpack.c.b16 %v156, %v155
  %v190 = vpack.c.b16 %v158, %v157
  %v191 = vpack.c.b16 %v160, %v159
  %v192 = vpack.c.b16 %v162, %v161
  %v193 = vpack.c.b16 %v164, %v163
  %v194 = vpack.c.b16 %v166, %v165
  %v195 = vpack.c.b16 %v168, %v167
  %v196 = vpack.c.b16 %v170, %v169
  %v197 = vpack.c.b16 %v172, %v171
  %v198 = vpack.c.b16 %v174, %v173
  %vm199 = vcmask 261120
  %v201 = vsel %vm199, %v72, 0
  %v204 = vsel %vm199, %v175, 0
  %v207 = vsel %vm199, %v176, 0
  %v210 = vsel %vm199, %v177, 0
  %v213 = vsel %vm199, %v178, 0
  %v216 = vsel %vm199, %v179, 0
  %v219 = vsel %vm199, %v180, 0
  %v222 = vsel %vm199, %v181, 0
  %v225 = vsel %vm199, %v182, 0
  %v228 = vsel %vm199, %v183, 0
  %v231 = vsel %vm199, %v184, 0
  %v234 = vsel %vm199, %v185, 0
  %v237 = vsel %vm199, %v186, 0
  %v240 = vsel %vm199, %v187, 0
  %v243 = vsel %vm199, %v188, 0
  %v246 = vsel %vm199, %v189, 0
  %v249 = vsel %vm199, %v190, 0
  %v252 = vsel %vm199, %v191, 0
  %v255 = vsel %vm199, %v192, 0
  %v258 = vsel %vm199, %v193, 0
  %v261 = vsel %vm199, %v194, 0
  %v264 = vsel %vm199, %v195, 0
  %v267 = vsel %vm199, %v196, 0
  %v270 = vsel %vm199, %v197, 0
  %v273 = vsel %vm199, %v198, 0
  %275 = vmatprep.subr.bf16.mxu0 0
  %276 = vmatpush1.bf16.xpose.msra.mxu0 %v225
  %277 = vmatprep.subr.bf16.mxu0 0
  %278 = vmatpush1.bf16.xpose.msra.mxu0 %v222
  %279 = vmatprep.subr.bf16.mxu0 0
  %280 = vmatpush1.bf16.xpose.msra.mxu0 %v219
  %281 = vmatprep.subr.bf16.mxu0 0
  %282 = vmatpush1.bf16.xpose.msra.mxu0 %v216
  %283 = vmatprep.subr.bf16.mxu0 0
  %284 = vmatpush1.bf16.xpose.msra.mxu0 %v213
  %285 = vmatprep.subr.bf16.mxu0 0
  %286 = vmatpush1.bf16.xpose.msra.mxu0 %v210
  %287 = vmatprep.subr.bf16.mxu0 0
  %288 = vmatpush1.bf16.xpose.msra.mxu0 %v207
  %289 = vmatprep.subr.bf16.mxu0 0
  %290 = vmatpush1.bf16.xpose.msra.mxu0 %v204
  %291 = vmatprep.subr.bf16.mxu0 0
  %292 = vmatpush2.bf16.xpose.msra.mxu0 %v249
  %293 = vmatprep.subr.bf16.mxu0 0
  %294 = vmatpush2.bf16.xpose.msra.mxu0 %v246
  %295 = vmatprep.subr.bf16.mxu0 0
  %296 = vmatpush2.bf16.xpose.msra.mxu0 %v243
  %297 = vmatprep.subr.bf16.mxu0 0
  %298 = vmatpush2.bf16.xpose.msra.mxu0 %v240
  %299 = vmatprep.subr.bf16.mxu0 0
  %300 = vmatpush2.bf16.xpose.msra.mxu0 %v237
  %301 = vmatprep.subr.bf16.mxu0 0
  %302 = vmatpush2.bf16.xpose.msra.mxu0 %v234
  %303 = vmatprep.subr.bf16.mxu0 0
  %304 = vmatpush2.bf16.xpose.msra.mxu0 %v231
  %305 = vmatprep.subr.bf16.mxu0 0
  %306 = vmatpush2.bf16.xpose.msra.mxu0 %v228
  %307 = vmatprep.mubr.bf16.mxu0 0
  %308 = vmatmul.mubr.bf16.gmra.mxu0 %v201
  %v309 = vpop.f32.mrf.mxu0
  %v310 = vadd.f32 0.0, %v309
  %v311 = vpop.f32.mrf.mxu0
  %v312 = vadd.f32 0.0, %v311
  %v313 = vpop.f32.mrf.mxu0
  %v314 = vadd.f32 0.0, %v313
  %v315 = vpop.f32.mrf.mxu0
  %v316 = vadd.f32 0.0, %v315
  %317 = vdwg.mxu0
  %318 = vmatprep.subr.bf16.mxu0 0
  %319 = vmatpush1.bf16.xpose.msra.mxu0 %v273
  %320 = vmatprep.subr.bf16.mxu0 0
  %321 = vmatpush1.bf16.xpose.msra.mxu0 %v270
  %322 = vmatprep.subr.bf16.mxu0 0
  %323 = vmatpush1.bf16.xpose.msra.mxu0 %v267
  %324 = vmatprep.subr.bf16.mxu0 0
  %325 = vmatpush1.bf16.xpose.msra.mxu0 %v264
  %326 = vmatprep.subr.bf16.mxu0 0
  %327 = vmatpush1.bf16.xpose.msra.mxu0 %v261
  %328 = vmatprep.subr.bf16.mxu0 0
  %329 = vmatpush1.bf16.xpose.msra.mxu0 %v258
  %330 = vmatprep.subr.bf16.mxu0 0
  %331 = vmatpush1.bf16.xpose.msra.mxu0 %v255
  %332 = vmatprep.subr.bf16.mxu0 0
  %333 = vmatpush1.bf16.xpose.msra.mxu0 %v252
  %334 = vmatprep.subr.bf16.mxu0 0
  %335 = vmatpush2.bf16.xpose.msra.mxu0 0
  %336 = vmatprep.subr.bf16.mxu0 0
  %337 = vmatpush2.bf16.xpose.msra.mxu0 0
  %338 = vmatprep.subr.bf16.mxu0 0
  %339 = vmatpush2.bf16.xpose.msra.mxu0 0
  %340 = vmatprep.subr.bf16.mxu0 0
  %341 = vmatpush2.bf16.xpose.msra.mxu0 0
  %342 = vmatprep.subr.bf16.mxu0 0
  %343 = vmatpush2.bf16.xpose.msra.mxu0 0
  %344 = vmatprep.subr.bf16.mxu0 0
  %345 = vmatpush2.bf16.xpose.msra.mxu0 0
  %346 = vmatprep.subr.bf16.mxu0 0
  %347 = vmatpush2.bf16.xpose.msra.mxu0 0
  %348 = vmatprep.subr.bf16.mxu0 0
  %349 = vmatpush2.bf16.xpose.msra.mxu0 0
  %350 = vmatprep.mubr.bf16.mxu0 0
  %351 = vmatmul.mubr.bf16.gmra.mxu0 %v201
  %v352 = vpop.f32.mrf.mxu0
  %v353 = vadd.f32 0.0, %v352
  %v354 = vpop.f32.mrf.mxu0
  %v355 = vpop.f32.mrf.mxu0
  %v356 = vadd.f32 0.0, %v355
  %v357 = vpop.f32.mrf.mxu0
  %358 = vdwg.mxu0
  %v359 = vadd.f32 %v73, %v310
  %v360 = vadd.f32 %v74, %v312
  %v361 = vadd.f32 %v75, %v353
  %v362 = vadd.f32 %v76, %v314
  %v363 = vadd.f32 %v77, %v316
  %v364 = vadd.f32 %v78, %v356
  %365 = vst [vmem:[#allocation2] sm:$0xff] %v359
  %366 = vst [vmem:[#allocation2 + $0x8] sm:$0xff] %v360
  %367 = vst [vmem:[#allocation2 + $0x10] sm:$0xff] %v361
  %368 = vst [vmem:[#allocation2 + $0x18] sm:$0xff] %v362
  %369 = vst [vmem:[#allocation2 + $0x20] sm:$0xff] %v363
  %370 = vst [vmem:[#allocation2 + $0x28] sm:$0xff] %v364
  // Predicated region
  $region14: #{attention_forward.3} parent=0 // pred_check
    %p371 = pneg %p12
  $region15: #{attention_forward.3} parent=0 // pred_check_branch
    %373 = sbr.rel (%p371) target = $region17
  $region16: #{attention_forward.3} parent=0 // pred_region
    %v374 = vld [vmem:[#allocation2] sm:$0xff]
    %v375 = vld [vmem:[#allocation2 + $0x8] sm:$0xff]
    %v376 = vld [vmem:[#allocation2 + $0x10] sm:$0xff]
    %v377 = vld [vmem:[#allocation2 + $0x18] sm:$0xff]
    %v378 = vld [vmem:[#allocation2 + $0x20] sm:$0xff]
    %v379 = vld [vmem:[#allocation2 + $0x28] sm:$0xff]
    %v380 = vpack.c.bf16 %v377, %v374
    %v381 = vpack.c.bf16 %v378, %v375
    %v382 = vpack.c.bf16 %v379, %v376
    %v386 = vunpack.c.l.b16 %v380
    %v387 = vunpack.c.l.b16 %v381
    %v388 = vunpack.c.l.b16 %v382
    %v389 = vunpack.c.h.b16 %v380
    %v390 = vunpack.c.h.b16 %v381
    %v391 = vunpack.c.h.b16 %v382
    %v392 = vpack.c.b16 %v387, %v386
    %v393 = vpack.c.b16 %v388, %v388
    %v394 = vpack.c.b16 %v390, %v389
    %v395 = vpack.c.b16 %v391, %v391
    %400 = vst [vmem:[%s2] sm:$0xff] %v392
    %401 = vst [vmem:[%s2 + $0x8] sm:$0xf] %v393
    %402 = vst [vmem:[%s2 + $0xc] sm:$0xff] %v394
    %403 = vst [vmem:[%s2 + $0x14] sm:$0xf] %v395
  $region17: #{attention_forward.3} parent=0 // pred_fallthru
    _
  // Predicated region
  $region18: #{attention_forward.3} parent=0 // pred_check
    _
  $region19: #{attention_forward.3} parent=0 // pred_check_branch
    %405 = sbr.rel (0) target = $region21
  $region20: #{attention_forward.3} parent=0 // pred_region
    _
  $region21: #{attention_forward.3} parent=0 // pred_fallthru
    _
  // Predicated region
  $region22: #{attention_forward.3} parent=0 // pred_check
    _
  $region23: #{attention_forward.3} parent=0 // pred_check_branch
    %407 = sbr.rel (0) target = $region25
  $region24: #{attention_forward.3} parent=0 // pred_region
    _
  $region25: #{attention_forward.3} parent=0 // pred_fallthru
    _

</llo_original>
